<compile_context>
chip_gen: v7x
topology: tpu7x:2x2x1
jax: 0.10.0
libtpu: 0.0.40
codegen_flags: <defaults>
</compile_context>

<pallas_src>
import jax
import jax.numpy as jnp
from jax import lax
from jax.experimental import pallas as pl
from jax.experimental.pallas import tpu as pltpu


def _round_up(v, m):
    return ((v + m - 1) // m) * m


_VMEM_LIMIT = 48 * (1 << 20)  # scoped VMEM cap; leaves headroom on all gens


# ---------------------------------------------------------------------------
# Kernels
# ---------------------------------------------------------------------------
def _rowmm_kernel(a_ref, b_ref, o_ref):
    """One output row tile: o = a_tile @ b (bf16 operands, f32 MXU accumulation)."""
    o_ref[...] = jnp.dot(
        a_ref[...], b_ref[...], preferred_element_type=jnp.float32
    ).astype(o_ref.dtype)


def _gcn_fused_kernel(adj_ref, s1_ref, w2_ref, o_ref):
    """One row tile of support2 = relu(adj @ support1) @ W2 (h1 stays in VMEM)."""
    h1 = jnp.dot(adj_ref[...], s1_ref[...], preferred_element_type=jnp.float32)
    h1 = jnp.maximum(h1, 0.0).astype(jnp.bfloat16)  # relu in f32, bf16 for MXU
    o_ref[...] = jnp.dot(
        h1, w2_ref[...], preferred_element_type=jnp.float32
    ).astype(o_ref.dtype)


def _gram_kernel(zi_ref, zj_ref, o_ref):
    """a_bar tile (i, j) = z_i @ z_j^T via contraction on the shared last axis."""
    zi = zi_ref[...].astype(jnp.bfloat16)
    zj = zj_ref[...].astype(jnp.bfloat16)
    o_ref[...] = lax.dot_general(
        zi, zj,
        dimension_numbers=(((1,), (1,)), ((), ())),  # contract last dims (no transpose)
        preferred_element_type=jnp.float32,
    ).astype(o_ref.dtype)


# ---------------------------------------------------------------------------
# Wrapper
# ---------------------------------------------------------------------------
@jax.jit
def gae_forward(x, adj, w1, w2):
    N, F = x.shape
    H = w1.shape[1]
    Z = w2.shape[1]

    # Lane-pad feature dims to 128; row-pad N to the row tile TM.
    Fp = _round_up(F, 128)
    Hp = _round_up(H, 128)
    Zp = _round_up(Z, 128)

    n8 = _round_up(N, 8)
    if n8 <= 256:
        TM = n8                      # single row block; block == full padded dims
    else:
        TM = 256
        # Keep the double-buffered bf16 adj row block under ~24 MiB (v7x budget).
        if 2 * TM * _round_up(N, TM) * 2 > 24 * (1 << 20):
            TM = 128
    Np = _round_up(N, TM)
    nb = Np // TM                    # number of row blocks

    bf16, f32 = jnp.bfloat16, jnp.float32

    # Zero-pad and cast MXU operands to bf16 (f32 accumulation inside kernels).
    xp = jnp.zeros((Np, Fp), bf16).at[:N, :F].set(x.astype(bf16))
    adjp = jnp.zeros((Np, Np), bf16).at[:N, :N].set(adj.astype(bf16))
    w1p = jnp.zeros((Fp, Hp), bf16).at[:F, :H].set(w1.astype(bf16))
    w2p = jnp.zeros((Hp, Zp), bf16).at[:H, :Z].set(w2.astype(bf16))

    row_params = pltpu.CompilerParams(
        dimension_semantics=("parallel",), vmem_limit_bytes=_VMEM_LIMIT)
    gram_params = pltpu.CompilerParams(
        dimension_semantics=("parallel", "parallel"), vmem_limit_bytes=_VMEM_LIMIT)

    def row_spec(cols):              # (TM, cols), tiled over output rows
        return pl.BlockSpec((TM, cols), lambda i: (i, 0))

    def full_spec(rows, cols):       # whole array, VMEM-resident across the grid
        return pl.BlockSpec((rows, cols), lambda i: (0, 0))

    # 1) support1 = x @ W1                                       (Np, Hp) bf16
    support1 = pl.pallas_call(
        _rowmm_kernel,
        out_shape=jax.ShapeDtypeStruct((Np, Hp), bf16),
        grid=(nb,),
        in_specs=[row_spec(Fp), full_spec(Fp, Hp)],
        out_specs=row_spec(Hp),
        compiler_params=row_params,
    )(xp, w1p)

    # 2) support2 = relu(adj @ support1) @ W2  (h1 never hits HBM)  (Np, Zp) bf16
    support2 = pl.pallas_call(
        _gcn_fused_kernel,
        out_shape=jax.ShapeDtypeStruct((Np, Zp), bf16),
        grid=(nb,),
        in_specs=[row_spec(Np), full_spec(Np, Hp), full_spec(Hp, Zp)],
        out_specs=row_spec(Zp),
        compiler_params=row_params,
    )(adjp, support1, w2p)

    # 3) z = adj @ support2                                       (Np, Zp) f32
    zp = pl.pallas_call(
        _rowmm_kernel,
        out_shape=jax.ShapeDtypeStruct((Np, Zp), f32),
        grid=(nb,),
        in_specs=[row_spec(Np), full_spec(Np, Zp)],
        out_specs=row_spec(Zp),
        compiler_params=row_params,
    )(adjp, support2)

    # 4) a_bar = z @ z.T, tiled as an (i, j) outer product         (Np, Np) f32
    abar_p = pl.pallas_call(
        _gram_kernel,
        out_shape=jax.ShapeDtypeStruct((Np, Np), f32),
        grid=(nb, nb),
        in_specs=[pl.BlockSpec((TM, Zp), lambda i, j: (i, 0)),
                  pl.BlockSpec((TM, Zp), lambda i, j: (j, 0))],
        out_specs=pl.BlockSpec((TM, TM), lambda i, j: (i, j)),
        compiler_params=gram_params,
    )(zp, zp)

    # Slice the logical (unpadded) outputs back out.
    return abar_p[:N, :N], zp[:N, :Z]


def glorot(key, shape):
    # Deterministic glorot-uniform init (matches GCN weight init convention).
    fan_in, fan_out = shape
    limit = jnp.sqrt(6.0 / (fan_in + fan_out))
    return jax.random.uniform(key, shape, jnp.float32, -limit, limit)


if __name__ == "__main__":
    # Small, module-consistent shapes:
    N = 16                # number of graph nodes
    input_feat_dim = 32
    hidden_dim1 = 16
    n_z = 8

    key = jax.random.PRNGKey(0)
    kx, kadj, kw1, kw2 = jax.random.split(key, 4)

    x = jax.random.normal(kx, (N, input_feat_dim), jnp.float32)

    # Symmetric normalized-ish dense adjacency (deterministic, synthetic).
    a = jax.random.uniform(kadj, (N, N), jnp.float32)
    a = (a + a.T) * 0.5 + jnp.eye(N, dtype=jnp.float32)
    deg = jnp.sum(a, axis=1, keepdims=True)
    adj = a / deg

    w1 = glorot(kw1, (input_feat_dim, hidden_dim1))
    w2 = glorot(kw2, (hidden_dim1, n_z))

    a_bar, z = gae_forward(x, adj, w1, w2)
    jax.block_until_ready((a_bar, z))

    # Pure-f32 JAX reference. Kernel uses bf16 operands with f32 accumulation,
    # so tolerances are bf16-level (per perf-review correctness note).
    h1_ref = jnp.maximum(adj @ (x @ w1), 0.0)
    z_ref = adj @ (h1_ref @ w2)
    abar_ref = z_ref @ z_ref.T
    assert z.shape == (N, n_z) and a_bar.shape == (N, N)
    assert jnp.allclose(z, z_ref, atol=2e-2, rtol=2e-2), \
        float(jnp.max(jnp.abs(z - z_ref)))
    assert jnp.allclose(a_bar, abar_ref, atol=2e-2, rtol=2e-2), \
        float(jnp.max(jnp.abs(a_bar - abar_ref)))

    print("KERNEL_OK")
</pallas_src>

<mosaic_0001>
module attributes {stable_mosaic.version = 11 : i64} {
  func.func @_rowmm_kernel(%arg0: i32, %arg1: memref<16x128xbf16, #tpu.memory_space<vmem>>, %arg2: memref<128x128xbf16, #tpu.memory_space<vmem>>, %arg3: memref<16x128xbf16, #tpu.memory_space<vmem>>) attributes {dimension_semantics = [#tpu.dimension_semantics<parallel>], iteration_bounds = array<i64: 1>, scalar_prefetch = 0 : i64, scratch_operands = 0 : i64, tpu.core_type = #tpu.core_type<tc>, window_params = [{transform_indices = @transform_0, window_bounds = array<i64: 16, 128>}, {pipeline_mode = #tpu.pipeline_mode<synchronous>, transform_indices = @transform_1, window_bounds = array<i64: 128, 128>}, {transform_indices = @transform_2, window_bounds = array<i64: 16, 128>}]} {
    %c0 = arith.constant 0 : index
    %c0_0 = arith.constant 0 : index
    %0 = vector.load %arg1[%c0, %c0_0] : memref<16x128xbf16, #tpu.memory_space<vmem>>, vector<16x128xbf16>
    %c0_1 = arith.constant 0 : index
    %c0_2 = arith.constant 0 : index
    %1 = vector.load %arg2[%c0_1, %c0_2] : memref<128x128xbf16, #tpu.memory_space<vmem>>, vector<128x128xbf16>
    %cst = arith.constant dense<0.000000e+00> : vector<16x128xf32>
    %2 = tpu.matmul %0, %1, %cst {dimension_numbers = #tpu.dot_dimension_numbers<[1], [0], [0], [1], [0, 0, 1, 1], [], []>} : vector<16x128xbf16>, vector<128x128xbf16>, vector<16x128xf32> -> vector<16x128xf32>
    %3 = arith.truncf %2 : vector<16x128xf32> to vector<16x128xbf16>
    %c0_3 = arith.constant 0 : index
    %c0_4 = arith.constant 0 : index
    %4 = vector.load %arg3[%c0_3, %c0_4] : memref<16x128xbf16, #tpu.memory_space<vmem>>, vector<16x128xbf16>
    tpu.vector_store %arg3[%c0_3, %c0_4], %3 {strides = array<i32>} : memref<16x128xbf16, #tpu.memory_space<vmem>>, vector<16x128xbf16>,
    return
  }
  func.func @transform_0(%arg0: i32) -> (i32, i32) {
    %c0_i32 = arith.constant 0 : i32
    %c0_i32_0 = arith.constant 0 : i32
    return %arg0, %c0_i32 : i32, i32
  }
  func.func @transform_1(%arg0: i32) -> (i32, i32) {
    %c0_i32 = arith.constant 0 : i32
    %c0_i32_0 = arith.constant 0 : i32
    %c0_i32_1 = arith.constant 0 : i32
    return %c0_i32, %c0_i32_0 : i32, i32
  }
  func.func @transform_2(%arg0: i32) -> (i32, i32) {
    %c0_i32 = arith.constant 0 : i32
    %c0_i32_0 = arith.constant 0 : i32
    return %arg0, %c0_i32 : i32, i32
  }
}

module attributes {stable_mosaic.version = 11 : i64} {
  func.func @_gcn_fused_kernel(%arg0: i32, %arg1: memref<16x16xbf16, #tpu.memory_space<vmem>>, %arg2: memref<16x128xbf16, #tpu.memory_space<vmem>>, %arg3: memref<128x128xbf16, #tpu.memory_space<vmem>>, %arg4: memref<16x128xbf16, #tpu.memory_space<vmem>>) attributes {dimension_semantics = [#tpu.dimension_semantics<parallel>], iteration_bounds = array<i64: 1>, scalar_prefetch = 0 : i64, scratch_operands = 0 : i64, tpu.core_type = #tpu.core_type<tc>, window_params = [{transform_indices = @transform_0, window_bounds = array<i64: 16, 16>}, {pipeline_mode = #tpu.pipeline_mode<synchronous>, transform_indices = @transform_1, window_bounds = array<i64: 16, 128>}, {pipeline_mode = #tpu.pipeline_mode<synchronous>, transform_indices = @transform_2, window_bounds = array<i64: 128, 128>}, {transform_indices = @transform_3, window_bounds = array<i64: 16, 128>}]} {
    %c0 = arith.constant 0 : index
    %c0_0 = arith.constant 0 : index
    %0 = vector.load %arg1[%c0, %c0_0] : memref<16x16xbf16, #tpu.memory_space<vmem>>, vector<16x16xbf16>
    %c0_1 = arith.constant 0 : index
    %c0_2 = arith.constant 0 : index
    %1 = vector.load %arg2[%c0_1, %c0_2] : memref<16x128xbf16, #tpu.memory_space<vmem>>, vector<16x128xbf16>
    %cst = arith.constant dense<0.000000e+00> : vector<16x128xf32>
    %2 = tpu.matmul %0, %1, %cst {dimension_numbers = #tpu.dot_dimension_numbers<[1], [0], [0], [1], [0, 0, 1, 1], [], []>} : vector<16x16xbf16>, vector<16x128xbf16>, vector<16x128xf32> -> vector<16x128xf32>
    %cst_3 = arith.constant 0.000000e+00 : f32
    %3 = vector.broadcast %cst_3 : f32 to vector<16x128xf32>
    %4 = arith.maximumf %2, %3 : vector<16x128xf32>
    %5 = arith.truncf %4 : vector<16x128xf32> to vector<16x128xbf16>
    %c0_4 = arith.constant 0 : index
    %c0_5 = arith.constant 0 : index
    %6 = vector.load %arg3[%c0_4, %c0_5] : memref<128x128xbf16, #tpu.memory_space<vmem>>, vector<128x128xbf16>
    %cst_6 = arith.constant dense<0.000000e+00> : vector<16x128xf32>
    %7 = tpu.matmul %5, %6, %cst_6 {dimension_numbers = #tpu.dot_dimension_numbers<[1], [0], [0], [1], [0, 0, 1, 1], [], []>} : vector<16x128xbf16>, vector<128x128xbf16>, vector<16x128xf32> -> vector<16x128xf32>
    %8 = arith.truncf %7 : vector<16x128xf32> to vector<16x128xbf16>
    %c0_7 = arith.constant 0 : index
    %c0_8 = arith.constant 0 : index
    %9 = vector.load %arg4[%c0_7, %c0_8] : memref<16x128xbf16, #tpu.memory_space<vmem>>, vector<16x128xbf16>
    tpu.vector_store %arg4[%c0_7, %c0_8], %8 {strides = array<i32>} : memref<16x128xbf16, #tpu.memory_space<vmem>>, vector<16x128xbf16>,
    return
  }
  func.func @transform_0(%arg0: i32) -> (i32, i32) {
    %c0_i32 = arith.constant 0 : i32
    %c0_i32_0 = arith.constant 0 : i32
    return %arg0, %c0_i32 : i32, i32
  }
  func.func @transform_1(%arg0: i32) -> (i32, i32) {
    %c0_i32 = arith.constant 0 : i32
    %c0_i32_0 = arith.constant 0 : i32
    %c0_i32_1 = arith.constant 0 : i32
    return %c0_i32, %c0_i32_0 : i32, i32
  }
  func.func @transform_2(%arg0: i32) -> (i32, i32) {
    %c0_i32 = arith.constant 0 : i32
    %c0_i32_0 = arith.constant 0 : i32
    %c0_i32_1 = arith.constant 0 : i32
    return %c0_i32, %c0_i32_0 : i32, i32
  }
  func.func @transform_3(%arg0: i32) -> (i32, i32) {
    %c0_i32 = arith.constant 0 : i32
    %c0_i32_0 = arith.constant 0 : i32
    return %arg0, %c0_i32 : i32, i32
  }
}

module attributes {stable_mosaic.version = 11 : i64} {
  func.func @_gram_kernel(%arg0: i32, %arg1: i32, %arg2: memref<16x128xf32, #tpu.memory_space<vmem>>, %arg3: memref<16x128xf32, #tpu.memory_space<vmem>>, %arg4: memref<16x16xf32, #tpu.memory_space<vmem>>) attributes {dimension_semantics = [#tpu.dimension_semantics<parallel>, #tpu.dimension_semantics<parallel>], iteration_bounds = array<i64: 1, 1>, scalar_prefetch = 0 : i64, scratch_operands = 0 : i64, tpu.core_type = #tpu.core_type<tc>, window_params = [{transform_indices = @transform_0, window_bounds = array<i64: 16, 128>}, {transform_indices = @transform_1, window_bounds = array<i64: 16, 128>}, {transform_indices = @transform_2, window_bounds = array<i64: 16, 16>}]} {
    %c0 = arith.constant 0 : index
    %c0_0 = arith.constant 0 : index
    %0 = vector.load %arg2[%c0, %c0_0] : memref<16x128xf32, #tpu.memory_space<vmem>>, vector<16x128xf32>
    %1 = arith.truncf %0 : vector<16x128xf32> to vector<16x128xbf16>
    %c0_1 = arith.constant 0 : index
    %c0_2 = arith.constant 0 : index
    %2 = vector.load %arg3[%c0_1, %c0_2] : memref<16x128xf32, #tpu.memory_space<vmem>>, vector<16x128xf32>
    %3 = arith.truncf %2 : vector<16x128xf32> to vector<16x128xbf16>
    %cst = arith.constant dense<0.000000e+00> : vector<16x16xf32>
    %4 = tpu.matmul %1, %3, %cst {dimension_numbers = #tpu.dot_dimension_numbers<[1], [1], [0], [0], [0, 0, 1, 0], [], []>} : vector<16x128xbf16>, vector<16x128xbf16>, vector<16x16xf32> -> vector<16x16xf32>
    %c0_3 = arith.constant 0 : index
    %c0_4 = arith.constant 0 : index
    %5 = vector.load %arg4[%c0_3, %c0_4] : memref<16x16xf32, #tpu.memory_space<vmem>>, vector<16x16xf32>
    tpu.vector_store %arg4[%c0_3, %c0_4], %4 {strides = array<i32>} : memref<16x16xf32, #tpu.memory_space<vmem>>, vector<16x16xf32>,
    return
  }
  func.func @transform_0(%arg0: i32, %arg1: i32) -> (i32, i32) {
    %c0_i32 = arith.constant 0 : i32
    %c0_i32_0 = arith.constant 0 : i32
    return %arg0, %c0_i32 : i32, i32
  }
  func.func @transform_1(%arg0: i32, %arg1: i32) -> (i32, i32) {
    %c0_i32 = arith.constant 0 : i32
    %c0_i32_0 = arith.constant 0 : i32
    return %arg1, %c0_i32 : i32, i32
  }
  func.func @transform_2(%arg0: i32, %arg1: i32) -> (i32, i32) {
    %c0_i32 = arith.constant 0 : i32
    return %arg0, %arg1 : i32, i32
  }
}

module attributes {stable_mosaic.version = 11 : i64} {
  func.func @_rowmm_kernel(%arg0: i32, %arg1: memref<16x16xbf16, #tpu.memory_space<vmem>>, %arg2: memref<16x128xbf16, #tpu.memory_space<vmem>>, %arg3: memref<16x128xf32, #tpu.memory_space<vmem>>) attributes {dimension_semantics = [#tpu.dimension_semantics<parallel>], iteration_bounds = array<i64: 1>, scalar_prefetch = 0 : i64, scratch_operands = 0 : i64, tpu.core_type = #tpu.core_type<tc>, window_params = [{transform_indices = @transform_0, window_bounds = array<i64: 16, 16>}, {pipeline_mode = #tpu.pipeline_mode<synchronous>, transform_indices = @transform_1, window_bounds = array<i64: 16, 128>}, {transform_indices = @transform_2, window_bounds = array<i64: 16, 128>}]} {
    %c0 = arith.constant 0 : index
    %c0_0 = arith.constant 0 : index
    %0 = vector.load %arg1[%c0, %c0_0] : memref<16x16xbf16, #tpu.memory_space<vmem>>, vector<16x16xbf16>
    %c0_1 = arith.constant 0 : index
    %c0_2 = arith.constant 0 : index
    %1 = vector.load %arg2[%c0_1, %c0_2] : memref<16x128xbf16, #tpu.memory_space<vmem>>, vector<16x128xbf16>
    %cst = arith.constant dense<0.000000e+00> : vector<16x128xf32>
    %2 = tpu.matmul %0, %1, %cst {dimension_numbers = #tpu.dot_dimension_numbers<[1], [0], [0], [1], [0, 0, 1, 1], [], []>} : vector<16x16xbf16>, vector<16x128xbf16>, vector<16x128xf32> -> vector<16x128xf32>
    %c0_3 = arith.constant 0 : index
    %c0_4 = arith.constant 0 : index
    %3 = vector.load %arg3[%c0_3, %c0_4] : memref<16x128xf32, #tpu.memory_space<vmem>>, vector<16x128xf32>
    tpu.vector_store %arg3[%c0_3, %c0_4], %2 {strides = array<i32>} : memref<16x128xf32, #tpu.memory_space<vmem>>, vector<16x128xf32>,
    return
  }
  func.func @transform_0(%arg0: i32) -> (i32, i32) {
    %c0_i32 = arith.constant 0 : i32
    %c0_i32_0 = arith.constant 0 : i32
    return %arg0, %c0_i32 : i32, i32
  }
  func.func @transform_1(%arg0: i32) -> (i32, i32) {
    %c0_i32 = arith.constant 0 : i32
    %c0_i32_0 = arith.constant 0 : i32
    %c0_i32_1 = arith.constant 0 : i32
    return %c0_i32, %c0_i32_0 : i32, i32
  }
  func.func @transform_2(%arg0: i32) -> (i32, i32) {
    %c0_i32 = arith.constant 0 : i32
    %c0_i32_0 = arith.constant 0 : i32
    return %arg0, %c0_i32 : i32, i32
  }
}

</mosaic_0001>

<llo_original>
// kernel: gae_forward.6
$region0: #{gae_forward.6}
  #allocation0 [shape = 'u32[]', space=smem, size = 0x4, offset = 0x4, fixed_abs, tag = 'smem constant byte address 0x4 - core index']
  #allocation1 [shape = 'u32[144,128]{1,0:T(1,128)}', space=vmem, size = 0x12000, scoped, tag = 'internal scratch']
  %s0 = inlined_call_operand.vmem [shape: bf16[16,16], index: 0, kind: input, shape index: {}]
  %s1 = inlined_call_operand.vmem [shape: bf16[16,128], index: 1, kind: input, shape index: {}]
  %s2 = inlined_call_operand.vmem [shape: f32[16,128], index: 2, kind: output, shape index: {}]
  %s3 = sld [smem:[#allocation0]]
  $region18: #{gae_forward.6} parent=0
    _
  %s5 = ssub.s32 1, %s3
  %s6 = scalar_select 0, %s5, %s3
  // Predicated region
  $region2: #{gae_forward.6} parent=0 // pred_check
    _
  $region3: #{gae_forward.6} parent=0 // pred_check_branch
    %8 = sbr.rel (0) target = $region5
  $region4: #{gae_forward.6} parent=0 // pred_region
    _
  $region5: #{gae_forward.6} parent=0 // pred_fallthru
    _
  // Predicated region
  $region6: #{gae_forward.6} parent=0 // pred_check
    _
  $region7: #{gae_forward.6} parent=0 // pred_check_branch
    %10 = sbr.rel (0) target = $region9
  $region8: #{gae_forward.6} parent=0 // pred_region
    _
  $region9: #{gae_forward.6} parent=0 // pred_fallthru
    _
  %v12 = vld [vmem:[%s0] sm:$0xf]
  %v13 = vld [vmem:[%s0 + $0x4] sm:$0xf]
  %v14 = vld [vmem:[%s1] sm:$0xf]
  %v15 = vld [vmem:[%s1 + $0x4] sm:$0xf]
  %v18 = vunpack.c.l.b16 %v12
  %v19 = vunpack.c.l.b16 %v13
  %v20 = vpack.c.b16 %v19, %v18
  %v23 = vunpack.c.l.b16 %v14
  %v24 = vunpack.c.l.b16 %v15
  %v25 = vpack.c.b16 %v24, %v23
  %vm27 = vcmask 130048
  %v29 = vsel %vm27, %v20, 0
  %31 = vmatprep.subr.bf16.mxu0 0
  %32 = vmatpush1.bf16.msra.mxu0 %v25
  %33 = vmatprep.subr.bf16.mxu0 0
  %34 = vmatpush1.bf16.msra.mxu0 0
  %35 = vmatprep.subr.bf16.mxu0 0
  %36 = vmatpush1.bf16.msra.mxu0 0
  %37 = vmatprep.subr.bf16.mxu0 0
  %38 = vmatpush1.bf16.msra.mxu0 0
  %39 = vmatprep.subr.bf16.mxu0 0
  %40 = vmatpush1.bf16.msra.mxu0 0
  %41 = vmatprep.subr.bf16.mxu0 0
  %42 = vmatpush1.bf16.msra.mxu0 0
  %43 = vmatprep.subr.bf16.mxu0 0
  %44 = vmatpush1.bf16.msra.mxu0 0
  %45 = vmatprep.subr.bf16.mxu0 0
  %46 = vmatpush1.bf16.msra.mxu0 0
  %47 = vmatprep.subr.bf16.mxu0 0
  %48 = vmatpush1.bf16.msra.mxu0 0
  %49 = vmatprep.subr.bf16.mxu0 0
  %50 = vmatpush1.bf16.msra.mxu0 0
  %51 = vmatprep.subr.bf16.mxu0 0
  %52 = vmatpush1.bf16.msra.mxu0 0
  %53 = vmatprep.subr.bf16.mxu0 0
  %54 = vmatpush1.bf16.msra.mxu0 0
  %55 = vmatprep.subr.bf16.mxu0 0
  %56 = vmatpush1.bf16.msra.mxu0 0
  %57 = vmatprep.subr.bf16.mxu0 0
  %58 = vmatpush1.bf16.msra.mxu0 0
  %59 = vmatprep.subr.bf16.mxu0 0
  %60 = vmatpush1.bf16.msra.mxu0 0
  %61 = vmatprep.subr.bf16.mxu0 0
  %62 = vmatpush1.bf16.msra.mxu0 0
  %63 = vmatprep.mubr.bf16.mxu0 0
  %64 = vmatmul.mubr.bf16.gmra.mrb[0].mxu0 %v29
  %v65 = vpop.f32.mrb[0].mxu0
  %v66 = vadd.f32 0.0, %v65
  %v67 = vpop.f32.mrb[0].mxu0
  %v68 = vpop.f32.mrb[0].mxu0
  %v69 = vadd.f32 0.0, %v68
  %v70 = vpop.f32.mrb[0].mxu0
  %71 = vdwg.mxu0
  %72 = vst [vmem:[%s2] sm:$0xff] %v66
  %73 = vst [vmem:[%s2 + $0x8] sm:$0xff] %v69
  // Predicated region
  $region10: #{gae_forward.6} parent=0 // pred_check
    _
  $region11: #{gae_forward.6} parent=0 // pred_check_branch
    %75 = sbr.rel (0) target = $region13
  $region12: #{gae_forward.6} parent=0 // pred_region
    _
  $region13: #{gae_forward.6} parent=0 // pred_fallthru
    _
  // Predicated region
  $region14: #{gae_forward.6} parent=0 // pred_check
    _
  $region15: #{gae_forward.6} parent=0 // pred_check_branch
    %77 = sbr.rel (0) target = $region17
  $region16: #{gae_forward.6} parent=0 // pred_region
    _
  $region17: #{gae_forward.6} parent=0 // pred_fallthru
    _

// kernel: gae_forward.7
$region0: #{gae_forward.7}
  #allocation0 [shape = 'u32[]', space=smem, size = 0x4, offset = 0x4, fixed_abs, tag = 'smem constant byte address 0x4 - core index']
  #allocation1 [shape = 'u32[144,128]{1,0:T(1,128)}', space=vmem, size = 0x12000, scoped, tag = 'internal scratch']
  %s0 = inlined_call_operand.vmem [shape: f32[16,128], index: 0, kind: input, shape index: {}, may-alias: {0,1}]
  %s1 = inlined_call_operand.vmem [shape: f32[16,128], index: 1, kind: input, shape index: {}, may-alias: {0,1}]
  %s2 = inlined_call_operand.hbm [shape: f32[16,16], index: 2, kind: output, shape index: {}]
  %s3 = sld [smem:[#allocation0]]
  $region18: #{gae_forward.7} parent=0
    _
  %s5 = ssub.s32 1, %s3
  %s6 = scalar_select 0, %s5, %s3
  $region1: #{gae_forward.7} parent=0
    #allocation2 [shape = 'u8[8192]{0}', space=vmem, size = 0x2000, scoped, tag = 'output window, operand 0, single buffered']
    #allocation3 [shape = 's32[1]{0}', space=sflag, size = 0x4, scoped, tag = 'scoped memory for gae_forward.7']
    %7 = vsyncpa [#allocation3], 0
    // Predicated region
    $region2: #{gae_forward.7} parent=1 // pred_check
      _
    $region3: #{gae_forward.7} parent=1 // pred_check_branch
      %9 = sbr.rel (0) target = $region5
    $region4: #{gae_forward.7} parent=1 // pred_region
      _
    $region5: #{gae_forward.7} parent=1 // pred_fallthru
      _
    // Predicated region
    $region6: #{gae_forward.7} parent=1 // pred_check
      _
    $region7: #{gae_forward.7} parent=1 // pred_check_branch
      %11 = sbr.rel (0) target = $region9
    $region8: #{gae_forward.7} parent=1 // pred_region
      _
    $region9: #{gae_forward.7} parent=1 // pred_fallthru
      _
    %v13 = vld [vmem:[%s0] sm:$0xff]
    %v14 = vld [vmem:[%s0 + $0x8] sm:$0xff]
    %v15 = vpack.c.bf16 %v14, %v13
    %v16 = vld [vmem:[%s1] sm:$0xff]
    %v17 = vld [vmem:[%s1 + $0x8] sm:$0xff]
    %v18 = vpack.c.bf16 %v17, %v16
    %19 = vmatprep.subr.bf16.mxu0 0
    %20 = vmatpush1.bf16.xpose.msra.mxu0 %v18
    %21 = vmatprep.subr.bf16.mxu0 0
    %22 = vmatpush1.bf16.xpose.msra.mxu0 0
    %23 = vmatprep.subr.bf16.mxu0 0
    %24 = vmatpush1.bf16.xpose.msra.mxu0 0
    %25 = vmatprep.subr.bf16.mxu0 0
    %26 = vmatpush1.bf16.xpose.msra.mxu0 0
    %27 = vmatprep.subr.bf16.mxu0 0
    %28 = vmatpush1.bf16.xpose.msra.mxu0 0
    %29 = vmatprep.subr.bf16.mxu0 0
    %30 = vmatpush1.bf16.xpose.msra.mxu0 0
    %31 = vmatprep.subr.bf16.mxu0 0
    %32 = vmatpush1.bf16.xpose.msra.mxu0 0
    %33 = vmatprep.subr.bf16.mxu0 0
    %34 = vmatpush1.bf16.xpose.msra.mxu0 0
    %35 = vmatprep.subr.bf16.mxu0 0
    %36 = vmatpush1.bf16.xpose.msra.mxu0 0
    %37 = vmatprep.subr.bf16.mxu0 0
    %38 = vmatpush1.bf16.xpose.msra.mxu0 0
    %39 = vmatprep.subr.bf16.mxu0 0
    %40 = vmatpush1.bf16.xpose.msra.mxu0 0
    %41 = vmatprep.subr.bf16.mxu0 0
    %42 = vmatpush1.bf16.xpose.msra.mxu0 0
    %43 = vmatprep.subr.bf16.mxu0 0
    %44 = vmatpush1.bf16.xpose.msra.mxu0 0
    %45 = vmatprep.subr.bf16.mxu0 0
    %46 = vmatpush1.bf16.xpose.msra.mxu0 0
    %47 = vmatprep.subr.bf16.mxu0 0
    %48 = vmatpush1.bf16.xpose.msra.mxu0 0
    %49 = vmatprep.subr.bf16.mxu0 0
    %50 = vmatpush1.bf16.xpose.msra.mxu0 0
    %51 = vmatprep.mubr.bf16.mxu0 0
    %52 = vmatmul.mubr.bf16.gmra.mrb[0].mxu0 %v15
    %v53 = vpop.f32.mrb[0].mxu0
    %v54 = vadd.f32 0.0, %v53
    %v55 = vpop.f32.mrb[0].mxu0
    %v56 = vpop.f32.mrb[0].mxu0
    %v57 = vadd.f32 0.0, %v56
    %v58 = vpop.f32.mrb[0].mxu0
    %59 = vdwg.mxu0
    %vm60 = vcmask 130048
    %61 = vst.msk [vmem:[#allocation2] sm:$0xff] %vm60, %v54
    %62 = vst.msk [vmem:[#allocation2 + $0x8] sm:$0xff] %vm60, %v57
    // Predicated region
    $region10: #{gae_forward.7} parent=1 // pred_check
      _
    $region11: #{gae_forward.7} parent=1 // pred_check_branch
      %64 = sbr.rel (0) target = $region13
    $region12: #{gae_forward.7} parent=1 // pred_region
      %s66 = ssub.s32 256, 256
      %67 = vsyncadd [#allocation3], %s66
      %s68 = sshll.u32 [#allocation2], 4
      %s69 = int_to_ptr.vmem [resolvable:$true] %s68
      %74 = dma.vmem_to_hbm [thread:$0]  %s69, 256, %s2, [#allocation3], 128, 128, 8
    $region13: #{gae_forward.7} parent=1 // pred_fallthru
      _
    // Predicated region
    $region14: #{gae_forward.7} parent=1 // pred_check
      _
    $region15: #{gae_forward.7} parent=1 // pred_check_branch
      %76 = sbr.rel (0) target = $region17
    $region16: #{gae_forward.7} parent=1 // pred_region
      %77 = dma.done [#allocation3], 256
    $region17: #{gae_forward.7} parent=1 // pred_fallthru
      _
    %78 = vsyncpa [#allocation3], 1

// kernel: gae_forward.4
$region0: #{gae_forward.4}
  #allocation0 [shape = 'u32[]', space=smem, size = 0x4, offset = 0x4, fixed_abs, tag = 'smem constant byte address 0x4 - core index']
  #allocation1 [shape = 'u32[144,128]{1,0:T(1,128)}', space=vmem, size = 0x12000, scoped, tag = 'internal scratch']
  %s0 = inlined_call_operand.vmem [shape: bf16[16,128], index: 0, kind: input, shape index: {}]
  %s1 = inlined_call_operand.vmem [shape: bf16[128,128], index: 1, kind: input, shape index: {}]
  %s2 = inlined_call_operand.vmem [shape: bf16[16,128], index: 2, kind: output, shape index: {}]
  %s3 = sld [smem:[#allocation0]]
  $region18: #{gae_forward.4} parent=0
    _
  %s5 = ssub.s32 1, %s3
  %s6 = scalar_select 0, %s5, %s3
  // Predicated region
  $region2: #{gae_forward.4} parent=0 // pred_check
    _
  $region3: #{gae_forward.4} parent=0 // pred_check_branch
    %8 = sbr.rel (0) target = $region5
  $region4: #{gae_forward.4} parent=0 // pred_region
    _
  $region5: #{gae_forward.4} parent=0 // pred_fallthru
    _
  // Predicated region
  $region6: #{gae_forward.4} parent=0 // pred_check
    _
  $region7: #{gae_forward.4} parent=0 // pred_check_branch
    %10 = sbr.rel (0) target = $region9
  $region8: #{gae_forward.4} parent=0 // pred_region
    _
  $region9: #{gae_forward.4} parent=0 // pred_fallthru
    _
  %v12 = vld [vmem:[%s0] sm:$0xf]
  %v13 = vld [vmem:[%s0 + $0x4] sm:$0xf]
  %v14 = vld [vmem:[%s1] sm:$0xf]
  %v15 = vld [vmem:[%s1 + $0x4] sm:$0xf]
  %v16 = vld [vmem:[%s1 + $0x8] sm:$0xf]
  %v17 = vld [vmem:[%s1 + $0xc] sm:$0xf]
  %v18 = vld [vmem:[%s1 + $0x10] sm:$0xf]
  %v19 = vld [vmem:[%s1 + $0x14] sm:$0xf]
  %v20 = vld [vmem:[%s1 + $0x18] sm:$0xf]
  %v21 = vld [vmem:[%s1 + $0x1c] sm:$0xf]
  %v22 = vld [vmem:[%s1 + $0x20] sm:$0xf]
  %v23 = vld [vmem:[%s1 + $0x24] sm:$0xf]
  %v24 = vld [vmem:[%s1 + $0x28] sm:$0xf]
  %v25 = vld [vmem:[%s1 + $0x2c] sm:$0xf]
  %v26 = vld [vmem:[%s1 + $0x30] sm:$0xf]
  %v27 = vld [vmem:[%s1 + $0x34] sm:$0xf]
  %v28 = vld [vmem:[%s1 + $0x38] sm:$0xf]
  %v29 = vld [vmem:[%s1 + $0x3c] sm:$0xf]
  %v32 = vunpack.c.l.b16 %v12
  %v33 = vunpack.c.l.b16 %v13
  %v34 = vpack.c.b16 %v33, %v32
  %v52 = vunpack.c.l.b16 %v14
  %v53 = vunpack.c.l.b16 %v15
  %v54 = vunpack.c.l.b16 %v16
  %v55 = vunpack.c.l.b16 %v17
  %v56 = vunpack.c.l.b16 %v18
  %v57 = vunpack.c.l.b16 %v19
  %v58 = vunpack.c.l.b16 %v20
  %v59 = vunpack.c.l.b16 %v21
  %v60 = vunpack.c.l.b16 %v22
  %v61 = vunpack.c.l.b16 %v23
  %v62 = vunpack.c.l.b16 %v24
  %v63 = vunpack.c.l.b16 %v25
  %v64 = vunpack.c.l.b16 %v26
  %v65 = vunpack.c.l.b16 %v27
  %v66 = vunpack.c.l.b16 %v28
  %v67 = vunpack.c.l.b16 %v29
  %v68 = vpack.c.b16 %v53, %v52
  %v69 = vpack.c.b16 %v55, %v54
  %v70 = vpack.c.b16 %v57, %v56
  %v71 = vpack.c.b16 %v59, %v58
  %v72 = vpack.c.b16 %v61, %v60
  %v73 = vpack.c.b16 %v63, %v62
  %v74 = vpack.c.b16 %v65, %v64
  %v75 = vpack.c.b16 %v67, %v66
  %84 = vmatprep.subr.bf16.mxu0 0
  %85 = vmatpush1.bf16.msra.mxu0 %v68
  %86 = vmatprep.subr.bf16.mxu0 0
  %87 = vmatpush1.bf16.msra.mxu0 %v69
  %88 = vmatprep.subr.bf16.mxu0 0
  %89 = vmatpush1.bf16.msra.mxu0 %v70
  %90 = vmatprep.subr.bf16.mxu0 0
  %91 = vmatpush1.bf16.msra.mxu0 %v71
  %92 = vmatprep.subr.bf16.mxu0 0
  %93 = vmatpush1.bf16.msra.mxu0 %v72
  %94 = vmatprep.subr.bf16.mxu0 0
  %95 = vmatpush1.bf16.msra.mxu0 %v73
  %96 = vmatprep.subr.bf16.mxu0 0
  %97 = vmatpush1.bf16.msra.mxu0 %v74
  %98 = vmatprep.subr.bf16.mxu0 0
  %99 = vmatpush1.bf16.msra.mxu0 %v75
  %100 = vmatprep.subr.bf16.mxu0 0
  %101 = vmatpush1.bf16.msra.mxu0 0
  %102 = vmatprep.subr.bf16.mxu0 0
  %103 = vmatpush1.bf16.msra.mxu0 0
  %104 = vmatprep.subr.bf16.mxu0 0
  %105 = vmatpush1.bf16.msra.mxu0 0
  %106 = vmatprep.subr.bf16.mxu0 0
  %107 = vmatpush1.bf16.msra.mxu0 0
  %108 = vmatprep.subr.bf16.mxu0 0
  %109 = vmatpush1.bf16.msra.mxu0 0
  %110 = vmatprep.subr.bf16.mxu0 0
  %111 = vmatpush1.bf16.msra.mxu0 0
  %112 = vmatprep.subr.bf16.mxu0 0
  %113 = vmatpush1.bf16.msra.mxu0 0
  %114 = vmatprep.subr.bf16.mxu0 0
  %115 = vmatpush1.bf16.msra.mxu0 0
  %116 = vmatprep.mubr.bf16.mxu0 0
  %117 = vmatmul.mubr.bf16.gmra.mrb[0].mxu0 %v34
  %v118 = vpop.f32.mrb[0].mxu0
  %v119 = vadd.f32 0.0, %v118
  %v120 = vpop.f32.mrb[0].mxu0
  %v121 = vpop.f32.mrb[0].mxu0
  %v122 = vadd.f32 0.0, %v121
  %v123 = vpop.f32.mrb[0].mxu0
  %124 = vdwg.mxu0
  %v125 = vpack.c.bf16 %v122, %v119
  %v127 = vunpack.c.l.b16 %v125
  %v128 = vunpack.c.h.b16 %v125
  %v129 = vpack.c.b16 %v127, %v127
  %v130 = vpack.c.b16 %v128, %v128
  %133 = vst [vmem:[%s2] sm:$0xf] %v129
  %134 = vst [vmem:[%s2 + $0x4] sm:$0xf] %v130
  // Predicated region
  $region10: #{gae_forward.4} parent=0 // pred_check
    _
  $region11: #{gae_forward.4} parent=0 // pred_check_branch
    %136 = sbr.rel (0) target = $region13
  $region12: #{gae_forward.4} parent=0 // pred_region
    _
  $region13: #{gae_forward.4} parent=0 // pred_fallthru
    _
  // Predicated region
  $region14: #{gae_forward.4} parent=0 // pred_check
    _
  $region15: #{gae_forward.4} parent=0 // pred_check_branch
    %138 = sbr.rel (0) target = $region17
  $region16: #{gae_forward.4} parent=0 // pred_region
    _
  $region17: #{gae_forward.4} parent=0 // pred_fallthru
    _

// kernel: gae_forward.5
$region0: #{gae_forward.5}
  #allocation0 [shape = 'u32[]', space=smem, size = 0x4, offset = 0x4, fixed_abs, tag = 'smem constant byte address 0x4 - core index']
  #allocation1 [shape = 'u32[144,128]{1,0:T(1,128)}', space=vmem, size = 0x12000, scoped, tag = 'internal scratch']
  %s0 = inlined_call_operand.vmem [shape: bf16[16,16], index: 0, kind: input, shape index: {}]
  %s1 = inlined_call_operand.vmem [shape: bf16[16,128], index: 1, kind: input, shape index: {}]
  %s2 = inlined_call_operand.vmem [shape: bf16[128,128], index: 2, kind: input, shape index: {}]
  %s3 = inlined_call_operand.vmem [shape: bf16[16,128], index: 3, kind: output, shape index: {}]
  %s4 = sld [smem:[#allocation0]]
  $region22: #{gae_forward.5} parent=0
    _
  %s6 = ssub.s32 1, %s4
  %s7 = scalar_select 0, %s6, %s4
  // Predicated region
  $region2: #{gae_forward.5} parent=0 // pred_check
    _
  $region3: #{gae_forward.5} parent=0 // pred_check_branch
    %9 = sbr.rel (0) target = $region5
  $region4: #{gae_forward.5} parent=0 // pred_region
    _
  $region5: #{gae_forward.5} parent=0 // pred_fallthru
    _
  // Predicated region
  $region6: #{gae_forward.5} parent=0 // pred_check
    _
  $region7: #{gae_forward.5} parent=0 // pred_check_branch
    %11 = sbr.rel (0) target = $region9
  $region8: #{gae_forward.5} parent=0 // pred_region
    _
  $region9: #{gae_forward.5} parent=0 // pred_fallthru
    _
  // Predicated region
  $region10: #{gae_forward.5} parent=0 // pred_check
    _
  $region11: #{gae_forward.5} parent=0 // pred_check_branch
    %13 = sbr.rel (0) target = $region13
  $region12: #{gae_forward.5} parent=0 // pred_region
    _
  $region13: #{gae_forward.5} parent=0 // pred_fallthru
    _
  %v15 = vld [vmem:[%s0] sm:$0xf]
  %v16 = vld [vmem:[%s0 + $0x4] sm:$0xf]
  %v17 = vld [vmem:[%s1] sm:$0xf]
  %v18 = vld [vmem:[%s1 + $0x4] sm:$0xf]
  %v21 = vunpack.c.l.b16 %v15
  %v22 = vunpack.c.l.b16 %v16
  %v23 = vpack.c.b16 %v22, %v21
  %v26 = vunpack.c.l.b16 %v17
  %v27 = vunpack.c.l.b16 %v18
  %v28 = vpack.c.b16 %v27, %v26
  %vm30 = vcmask 130048
  %v32 = vsel %vm30, %v23, 0
  %34 = vmatprep.subr.bf16.mxu0 0
  %35 = vmatpush1.bf16.msra.mxu0 %v28
  %36 = vmatprep.subr.bf16.mxu0 0
  %37 = vmatpush1.bf16.msra.mxu0 0
  %38 = vmatprep.subr.bf16.mxu0 0
  %39 = vmatpush1.bf16.msra.mxu0 0
  %40 = vmatprep.subr.bf16.mxu0 0
  %41 = vmatpush1.bf16.msra.mxu0 0
  %42 = vmatprep.subr.bf16.mxu0 0
  %43 = vmatpush1.bf16.msra.mxu0 0
  %44 = vmatprep.subr.bf16.mxu0 0
  %45 = vmatpush1.bf16.msra.mxu0 0
  %46 = vmatprep.subr.bf16.mxu0 0
  %47 = vmatpush1.bf16.msra.mxu0 0
  %48 = vmatprep.subr.bf16.mxu0 0
  %49 = vmatpush1.bf16.msra.mxu0 0
  %50 = vmatprep.subr.bf16.mxu0 0
  %51 = vmatpush1.bf16.msra.mxu0 0
  %52 = vmatprep.subr.bf16.mxu0 0
  %53 = vmatpush1.bf16.msra.mxu0 0
  %54 = vmatprep.subr.bf16.mxu0 0
  %55 = vmatpush1.bf16.msra.mxu0 0
  %56 = vmatprep.subr.bf16.mxu0 0
  %57 = vmatpush1.bf16.msra.mxu0 0
  %58 = vmatprep.subr.bf16.mxu0 0
  %59 = vmatpush1.bf16.msra.mxu0 0
  %60 = vmatprep.subr.bf16.mxu0 0
  %61 = vmatpush1.bf16.msra.mxu0 0
  %62 = vmatprep.subr.bf16.mxu0 0
  %63 = vmatpush1.bf16.msra.mxu0 0
  %64 = vmatprep.subr.bf16.mxu0 0
  %65 = vmatpush1.bf16.msra.mxu0 0
  %66 = vmatprep.mubr.bf16.mxu0 0
  %67 = vmatmul.mubr.bf16.gmra.mrb[0].mxu0 %v32
  %v68 = vpop.f32.mrb[0].mxu0
  %v69 = vadd.f32 0.0, %v68
  %v70 = vpop.f32.mrb[0].mxu0
  %v71 = vpop.f32.mrb[0].mxu0
  %v72 = vadd.f32 0.0, %v71
  %v73 = vpop.f32.mrb[0].mxu0
  %74 = vdwg.mxu0
  %v75 = vmax.f32 %v69, 0.0
  %v76 = vmax.f32 %v72, 0.0
  %v77 = vpack.c.bf16 %v76, %v75
  %v78 = vld [vmem:[%s2] sm:$0xf]
  %v79 = vld [vmem:[%s2 + $0x4] sm:$0xf]
  %v80 = vld [vmem:[%s2 + $0x8] sm:$0xf]
  %v81 = vld [vmem:[%s2 + $0xc] sm:$0xf]
  %v82 = vld [vmem:[%s2 + $0x10] sm:$0xf]
  %v83 = vld [vmem:[%s2 + $0x14] sm:$0xf]
  %v84 = vld [vmem:[%s2 + $0x18] sm:$0xf]
  %v85 = vld [vmem:[%s2 + $0x1c] sm:$0xf]
  %v86 = vld [vmem:[%s2 + $0x20] sm:$0xf]
  %v87 = vld [vmem:[%s2 + $0x24] sm:$0xf]
  %v88 = vld [vmem:[%s2 + $0x28] sm:$0xf]
  %v89 = vld [vmem:[%s2 + $0x2c] sm:$0xf]
  %v90 = vld [vmem:[%s2 + $0x30] sm:$0xf]
  %v91 = vld [vmem:[%s2 + $0x34] sm:$0xf]
  %v92 = vld [vmem:[%s2 + $0x38] sm:$0xf]
  %v93 = vld [vmem:[%s2 + $0x3c] sm:$0xf]
  %v110 = vunpack.c.l.b16 %v78
  %v111 = vunpack.c.l.b16 %v79
  %v112 = vunpack.c.l.b16 %v80
  %v113 = vunpack.c.l.b16 %v81
  %v114 = vunpack.c.l.b16 %v82
  %v115 = vunpack.c.l.b16 %v83
  %v116 = vunpack.c.l.b16 %v84
  %v117 = vunpack.c.l.b16 %v85
  %v118 = vunpack.c.l.b16 %v86
  %v119 = vunpack.c.l.b16 %v87
  %v120 = vunpack.c.l.b16 %v88
  %v121 = vunpack.c.l.b16 %v89
  %v122 = vunpack.c.l.b16 %v90
  %v123 = vunpack.c.l.b16 %v91
  %v124 = vunpack.c.l.b16 %v92
  %v125 = vunpack.c.l.b16 %v93
  %v126 = vpack.c.b16 %v111, %v110
  %v127 = vpack.c.b16 %v113, %v112
  %v128 = vpack.c.b16 %v115, %v114
  %v129 = vpack.c.b16 %v117, %v116
  %v130 = vpack.c.b16 %v119, %v118
  %v131 = vpack.c.b16 %v121, %v120
  %v132 = vpack.c.b16 %v123, %v122
  %v133 = vpack.c.b16 %v125, %v124
  %142 = vmatprep.subr.bf16.mxu0 0
  %143 = vmatpush1.bf16.msra.mxu0 %v126
  %144 = vmatprep.subr.bf16.mxu0 0
  %145 = vmatpush1.bf16.msra.mxu0 %v127
  %146 = vmatprep.subr.bf16.mxu0 0
  %147 = vmatpush1.bf16.msra.mxu0 %v128
  %148 = vmatprep.subr.bf16.mxu0 0
  %149 = vmatpush1.bf16.msra.mxu0 %v129
  %150 = vmatprep.subr.bf16.mxu0 0
  %151 = vmatpush1.bf16.msra.mxu0 %v130
  %152 = vmatprep.subr.bf16.mxu0 0
  %153 = vmatpush1.bf16.msra.mxu0 %v131
  %154 = vmatprep.subr.bf16.mxu0 0
  %155 = vmatpush1.bf16.msra.mxu0 %v132
  %156 = vmatprep.subr.bf16.mxu0 0
  %157 = vmatpush1.bf16.msra.mxu0 %v133
  %158 = vmatprep.subr.bf16.mxu0 0
  %159 = vmatpush1.bf16.msra.mxu0 0
  %160 = vmatprep.subr.bf16.mxu0 0
  %161 = vmatpush1.bf16.msra.mxu0 0
  %162 = vmatprep.subr.bf16.mxu0 0
  %163 = vmatpush1.bf16.msra.mxu0 0
  %164 = vmatprep.subr.bf16.mxu0 0
  %165 = vmatpush1.bf16.msra.mxu0 0
  %166 = vmatprep.subr.bf16.mxu0 0
  %167 = vmatpush1.bf16.msra.mxu0 0
  %168 = vmatprep.subr.bf16.mxu0 0
  %169 = vmatpush1.bf16.msra.mxu0 0
  %170 = vmatprep.subr.bf16.mxu0 0
  %171 = vmatpush1.bf16.msra.mxu0 0
  %172 = vmatprep.subr.bf16.mxu0 0
  %173 = vmatpush1.bf16.msra.mxu0 0
  %174 = vmatprep.mubr.bf16.mxu0 0
  %175 = vmatmul.mubr.bf16.gmra.mrb[0].mxu0 %v77
  %v176 = vpop.f32.mrb[0].mxu0
  %v177 = vadd.f32 0.0, %v176
  %v178 = vpop.f32.mrb[0].mxu0
  %v179 = vpop.f32.mrb[0].mxu0
  %v180 = vadd.f32 0.0, %v179
  %v181 = vpop.f32.mrb[0].mxu0
  %182 = vdwg.mxu0
  %v183 = vpack.c.bf16 %v180, %v177
  %v185 = vunpack.c.l.b16 %v183
  %v186 = vunpack.c.h.b16 %v183
  %v187 = vpack.c.b16 %v185, %v185
  %v188 = vpack.c.b16 %v186, %v186
  %191 = vst [vmem:[%s3] sm:$0xf] %v187
  %192 = vst [vmem:[%s3 + $0x4] sm:$0xf] %v188
  // Predicated region
  $region14: #{gae_forward.5} parent=0 // pred_check
    _
  $region15: #{gae_forward.5} parent=0 // pred_check_branch
    %194 = sbr.rel (0) target = $region17
  $region16: #{gae_forward.5} parent=0 // pred_region
    _
  $region17: #{gae_forward.5} parent=0 // pred_fallthru
    _
  // Predicated region
  $region18: #{gae_forward.5} parent=0 // pred_check
    _
  $region19: #{gae_forward.5} parent=0 // pred_check_branch
    %196 = sbr.rel (0) target = $region21
  $region20: #{gae_forward.5} parent=0 // pred_region
    _
  $region21: #{gae_forward.5} parent=0 // pred_fallthru
    _

</llo_original>
